<compile_context>
chip_gen: v6e
topology: v6e:2x2x1
jax: 0.10.0
libtpu: 0.0.40
codegen_flags: <defaults>
</compile_context>

<pallas_src>
import functools

import jax
import jax.numpy as jnp
from jax.experimental import pallas as pl
from jax.experimental.pallas import tpu as pltpu

BN_EPS = 1e-5
LANE = 128
SUBLANE = 8
VOCAB_TILE_MAX = 2048   # cap fc1 reduction tile so huge vocabularies fit in VMEM


def _softplus(x):
    # Numerically-stable softplus; matches F.softplus within fp32 precision.
    return jnp.maximum(x, 0.0) + jnp.log1p(jnp.exp(-jnp.abs(x)))


def _round_up(n, m):
    return ((n + m - 1) // m) * m


def _padded_dims(B, V, H, batch_tile=None, vocab_tile=None):
    Hp = _round_up(H, LANE)
    if vocab_tile is None:
        vocab_tile = min(_round_up(V, LANE), VOCAB_TILE_MAX)
    Vp = _round_up(V, vocab_tile)
    if batch_tile is None:
        batch_tile = _round_up(B, SUBLANE) if B <= 128 else 128
    Bp = _round_up(B, batch_tile)
    return Bp, batch_tile, Vp, vocab_tile, Hp


def _encoder_kernel(
    x_ref,            # (TB, TV)  compute_dtype   -- batch x vocab tile
    w1_ref, b1_ref,   # (TV, Hp)  compute_dtype, (1, Hp) fp32
    w2_ref, b2_ref,   # (Hp, Hp)  compute_dtype, (1, Hp) fp32
    wh_ref, bh_ref,   # (Hp, KP)  compute_dtype, (1, KP) fp32 -- fused BN-folded heads
    out_ref,          # (TB, KP)  fp32: [loc | scale | pad]
    acc_ref,          # (TB, Hp)  fp32 scratch   -- fc1 accumulator over vocab tiles
):
    kv = pl.program_id(1)

    @pl.when(kv == 0)
    def _():
        acc_ref[...] = jnp.zeros_like(acc_ref)

    # fc1 partial product for this vocab tile (fp32 MXU accumulation).
    acc_ref[...] += jnp.dot(x_ref[...], w1_ref[...],
                            preferred_element_type=jnp.float32)

    @pl.when(kv == pl.num_programs(1) - 1)
    def _():
        cd = w2_ref.dtype

        # fc1 epilogue + softplus
        h = _softplus(acc_ref[...] + b1_ref[...])

        # fc2 + softplus
        h = _softplus(
            jnp.dot(h.astype(cd), w2_ref[...],
                    preferred_element_type=jnp.float32) + b2_ref[...])

        # dropout: identity in eval mode.

        # fused mu|logvar heads (BatchNorm already folded into weights/bias):
        # single lane-dense (KP multiple of 128) output store.
        out = jnp.dot(h.astype(cd), wh_ref[...],
                      preferred_element_type=jnp.float32) + bh_ref[...]
        out_ref[...] = out.astype(out_ref.dtype)


def _prepare_params(params, compute_dtype, vp, hp):
    """Fold eval-mode BN into the head linears, fuse mu/lv heads, zero-pad to
    lane-dense (multiple-of-128) widths.  Padded weight rows are zero so padded
    hidden units (softplus(0)) never reach the output."""
    w1 = params["w1"]
    b1 = params["b1"].reshape(-1)
    w2 = params["w2"]
    b2 = params["b2"].reshape(-1)
    V, H = w1.shape

    def fold(w, b, bn):
        gamma, beta, rmean, rvar = bn[0], bn[1], bn[2], bn[3]
        s = gamma * jax.lax.rsqrt(rvar + BN_EPS)        # (K,)
        w_f = w * s[None, :]                            # (H, K)
        b_f = (b.reshape(-1) - rmean) * s + beta        # (K,)
        return w_f, b_f

    wmu_f, bmu_f = fold(params["wmu"], params["bmu"], params["bnmu"])
    wlv_f, blv_f = fold(params["wlv"], params["blv"], params["bnlv"])

    wh = jnp.concatenate([wmu_f, wlv_f], axis=1)        # (H, 2K)
    bh = jnp.concatenate([bmu_f, blv_f], axis=0)        # (2K,)
    kp = _round_up(wh.shape[1], LANE)

    w1 = jnp.pad(w1, ((0, vp - V), (0, hp - H)))
    b1 = jnp.pad(b1, (0, hp - H))
    w2 = jnp.pad(w2, ((0, hp - H), (0, hp - H)))
    b2 = jnp.pad(b2, (0, hp - H))
    wh = jnp.pad(wh, ((0, hp - H), (0, kp - wh.shape[1])))
    bh = jnp.pad(bh, (0, kp - bh.shape[0]))

    return (w1.astype(compute_dtype), b1.astype(jnp.float32).reshape(1, hp),
            w2.astype(compute_dtype), b2.astype(jnp.float32).reshape(1, hp),
            wh.astype(compute_dtype), bh.astype(jnp.float32).reshape(1, kp))


@functools.partial(jax.jit, static_argnames=("batch_tile", "vocab_tile", "compute_dtype"))
def encoder_forward(x, params, *, batch_tile=None, vocab_tile=None,
                    compute_dtype=jnp.bfloat16):
    """x: (B, V) float32. params: dict (see init_params). Returns (loc, scale) fp32."""
    B, V = x.shape
    H = params["w1"].shape[1]
    K = params["wmu"].shape[1]

    Bp, batch_tile, Vp, vocab_tile, Hp = _padded_dims(B, V, H, batch_tile, vocab_tile)

    w1, b1, w2, b2, wh, bh = _prepare_params(params, compute_dtype, Vp, Hp)
    KP = wh.shape[1]

    x = x.astype(compute_dtype)                # bag-of-words counts are exact in bf16
    if (Bp, Vp) != (B, V):
        x = jnp.pad(x, ((0, Bp - B), (0, Vp - V)))

    grid = (Bp // batch_tile, Vp // vocab_tile)

    const = lambda i, k: (0, 0)                # constant weight/bias blocks
    # NOTE: the constant blocks keep the same block index across the whole grid,
    # so they are fetched once; at huge hidden sizes they could be single-buffered
    # (pipeline_mode=pl.Buffered(1)) to save VMEM, not needed at these shapes.
    in_specs = [
        pl.BlockSpec((batch_tile, vocab_tile), lambda i, k: (i, k)),  # x
        pl.BlockSpec((vocab_tile, Hp), lambda i, k: (k, 0)),          # w1
        pl.BlockSpec((1, Hp), const),                                 # b1
        pl.BlockSpec((Hp, Hp), const),                                # w2
        pl.BlockSpec((1, Hp), const),                                 # b2
        pl.BlockSpec((Hp, KP), const),                                # fused head weights
        pl.BlockSpec((1, KP), const),                                 # fused head bias
    ]
    out_specs = pl.BlockSpec((batch_tile, KP), lambda i, k: (i, 0))
    out_shape = jax.ShapeDtypeStruct((Bp, KP), jnp.float32)

    out = pl.pallas_call(
        _encoder_kernel,
        grid_spec=pltpu.PrefetchScalarGridSpec(
            num_scalar_prefetch=0,
            grid=grid,
            in_specs=in_specs,
            out_specs=out_specs,
            scratch_shapes=[pltpu.VMEM((batch_tile, Hp), jnp.float32)],
        ),
        out_shape=out_shape,
        compiler_params=pltpu.CompilerParams(
            dimension_semantics=("parallel", "arbitrary")),
    )(x, w1, b1, w2, b2, wh, bh)

    loc = out[:B, :K]
    scale = out[:B, K:2 * K]
    return loc, scale


def init_params(key, vocab_size, hidden, num_topics):
    """Deterministic synthetic parameters. Linear weights stored as [in, out]."""
    ks = jax.random.split(key, 12)

    def lin(kw, kb, fan_in, fan_out):
        bound = 1.0 / jnp.sqrt(fan_in)
        w = jax.random.uniform(kw, (fan_in, fan_out), jnp.float32, -bound, bound)
        b = jax.random.uniform(kb, (1, fan_out), jnp.float32, -bound, bound)
        return w, b

    w1, b1 = lin(ks[0], ks[1], vocab_size, hidden)
    w2, b2 = lin(ks[2], ks[3], hidden, hidden)
    wmu, bmu = lin(ks[4], ks[5], hidden, num_topics)
    wlv, blv = lin(ks[6], ks[7], hidden, num_topics)

    def bn(kg, kb, km, kv, n):
        gamma = 1.0 + 0.1 * jax.random.normal(kg, (n,), jnp.float32)
        beta = 0.1 * jax.random.normal(kb, (n,), jnp.float32)
        rmean = 0.1 * jax.random.normal(km, (n,), jnp.float32)
        rvar = 1.0 + 0.1 * jax.random.uniform(kv, (n,), jnp.float32)
        return jnp.stack([gamma, beta, rmean, rvar], axis=0)  # (4, n)

    kbn = jax.random.split(ks[8], 8)
    bnmu = bn(kbn[0], kbn[1], kbn[2], kbn[3], num_topics)
    bnlv = bn(kbn[4], kbn[5], kbn[6], kbn[7], num_topics)

    return dict(w1=w1, b1=b1, w2=w2, b2=b2, wmu=wmu, bmu=bmu,
                wlv=wlv, blv=blv, bnmu=bnmu, bnlv=bnlv)


def reference_forward(x, params):
    """Pure-JAX fp32 reference of the eval-mode PyTorch forward (BN applied post-matmul)."""
    h = _softplus(x @ params["w1"] + params["b1"])
    h = _softplus(h @ params["w2"] + params["b2"])

    def bn_apply(y, bnp):
        g, b, rm, rv = bnp[0], bnp[1], bnp[2], bnp[3]
        return (y - rm) * jax.lax.rsqrt(rv + BN_EPS) * g + b

    loc = bn_apply(h @ params["wmu"] + params["bmu"], params["bnmu"])
    scale = bn_apply(h @ params["wlv"] + params["blv"], params["bnlv"])
    return loc, scale


def reference_prepared(x, prepped):
    """Plain-JAX mirror of the exact kernel math (folded BN, fused heads, padding, bf16 cast)."""
    w1, b1, w2, b2, wh, bh = prepped
    cd = w1.dtype
    xp = jnp.pad(x, ((0, 0), (0, w1.shape[0] - x.shape[1]))).astype(cd)
    h = _softplus(jnp.dot(xp, w1, preferred_element_type=jnp.float32) + b1)
    h = _softplus(jnp.dot(h.astype(cd), w2, preferred_element_type=jnp.float32) + b2)
    return jnp.dot(h.astype(cd), wh, preferred_element_type=jnp.float32) + bh


if __name__ == "__main__":
    # Small shapes: batch=16, vocab_size=256, hidden=64, num_topics=32
    B, V, H, K = 16, 256, 64, 32

    key = jax.random.PRNGKey(0)
    kx, kp = jax.random.split(key)

    # ProdLDA inputs are bag-of-words counts; use non-negative synthetic counts.
    x = jax.random.poisson(kx, 1.0, (B, V)).astype(jnp.float32)
    params = init_params(kp, V, H, K)

    # Default (bf16 compute) fast path.
    loc, scale = encoder_forward(x, params)
    jax.block_until_ready(loc)
    jax.block_until_ready(scale)

    # Check the bf16 kernel against identical-math plain-JAX computation.
    _, _, Vp, _, Hp = _padded_dims(B, V, H)
    prepped = _prepare_params(params, jnp.bfloat16, Vp, Hp)
    ref_out = reference_prepared(x, prepped)
    assert jnp.allclose(loc, ref_out[:B, :K], atol=1e-3, rtol=1e-3)
    assert jnp.allclose(scale, ref_out[:B, K:2 * K], atol=1e-3, rtol=1e-3)

    # fp32 compute path vs exact eval-mode module semantics (validates BN folding,
    # head fusion and the zero-padding against the original, un-folded math).
    loc32, scale32 = encoder_forward(x, params, compute_dtype=jnp.float32)
    ref_loc, ref_scale = reference_forward(x, params)
    assert jnp.allclose(loc32, ref_loc, atol=5e-4, rtol=5e-4)
    assert jnp.allclose(scale32, ref_scale, atol=5e-4, rtol=5e-4)

    print("KERNEL_OK")
</pallas_src>

<mosaic_0001>
module attributes {stable_mosaic.version = 11 : i64} {
  func.func @_encoder_kernel(%arg0: i32, %arg1: i32, %arg2: memref<16x256xbf16, #tpu.memory_space<vmem>>, %arg3: memref<256x128xbf16, #tpu.memory_space<vmem>>, %arg4: memref<1x128xf32, #tpu.memory_space<vmem>>, %arg5: memref<128x128xbf16, #tpu.memory_space<vmem>>, %arg6: memref<1x128xf32, #tpu.memory_space<vmem>>, %arg7: memref<128x128xbf16, #tpu.memory_space<vmem>>, %arg8: memref<1x128xf32, #tpu.memory_space<vmem>>, %arg9: memref<16x128xf32, #tpu.memory_space<vmem>>, %arg10: memref<16x128xf32, #tpu.memory_space<vmem>>) attributes {dimension_semantics = [#tpu.dimension_semantics<parallel>, #tpu.dimension_semantics<arbitrary>], iteration_bounds = array<i64: 1, 1>, scalar_prefetch = 0 : i64, scratch_operands = 1 : i64, tpu.core_type = #tpu.core_type<tc>, window_params = [{transform_indices = @transform_0, window_bounds = array<i64: 16, 256>}, {transform_indices = @transform_1, window_bounds = array<i64: 256, 128>}, {pipeline_mode = #tpu.pipeline_mode<synchronous>, transform_indices = @transform_2, window_bounds = array<i64: 1, 128>}, {pipeline_mode = #tpu.pipeline_mode<synchronous>, transform_indices = @transform_3, window_bounds = array<i64: 128, 128>}, {pipeline_mode = #tpu.pipeline_mode<synchronous>, transform_indices = @transform_4, window_bounds = array<i64: 1, 128>}, {pipeline_mode = #tpu.pipeline_mode<synchronous>, transform_indices = @transform_5, window_bounds = array<i64: 128, 128>}, {pipeline_mode = #tpu.pipeline_mode<synchronous>, transform_indices = @transform_6, window_bounds = array<i64: 1, 128>}, {transform_indices = @transform_7, window_bounds = array<i64: 16, 128>}]} {
    %c0_i32 = arith.constant 0 : i32
    %0 = arith.cmpi eq, %arg1, %c0_i32 : i32
    %1 = arith.extui %0 : i1 to i32
    %c0_i32_0 = arith.constant 0 : i32
    %2 = arith.cmpi ne, %1, %c0_i32_0 : i32
    scf.if %2 {
      %cst_10 = arith.constant 0.000000e+00 : f32
      %12 = vector.broadcast %cst_10 : f32 to vector<16x128xf32>
      %c0_11 = arith.constant 0 : index
      %c0_12 = arith.constant 0 : index
      %13 = vector.load %arg10[%c0_11, %c0_12] : memref<16x128xf32, #tpu.memory_space<vmem>>, vector<16x128xf32>
      tpu.vector_store %arg10[%c0_11, %c0_12], %12 {strides = array<i32>} : memref<16x128xf32, #tpu.memory_space<vmem>>, vector<16x128xf32>,
    } else {
    }
    %c0 = arith.constant 0 : index
    %c0_1 = arith.constant 0 : index
    %3 = vector.load %arg10[%c0, %c0_1] : memref<16x128xf32, #tpu.memory_space<vmem>>, vector<16x128xf32>
    %c0_2 = arith.constant 0 : index
    %c0_3 = arith.constant 0 : index
    %4 = vector.load %arg2[%c0_2, %c0_3] : memref<16x256xbf16, #tpu.memory_space<vmem>>, vector<16x256xbf16>
    %c0_4 = arith.constant 0 : index
    %c0_5 = arith.constant 0 : index
    %5 = vector.load %arg3[%c0_4, %c0_5] : memref<256x128xbf16, #tpu.memory_space<vmem>>, vector<256x128xbf16>
    %cst = arith.constant dense<0.000000e+00> : vector<16x128xf32>
    %6 = tpu.matmul %4, %5, %cst {dimension_numbers = #tpu.dot_dimension_numbers<[1], [0], [0], [1], [0, 0, 1, 1], [], []>} : vector<16x256xbf16>, vector<256x128xbf16>, vector<16x128xf32> -> vector<16x128xf32>
    %7 = arith.addf %3, %6 : vector<16x128xf32>
    %c0_6 = arith.constant 0 : index
    %c0_7 = arith.constant 0 : index
    %8 = vector.load %arg10[%c0_6, %c0_7] : memref<16x128xf32, #tpu.memory_space<vmem>>, vector<16x128xf32>
    tpu.vector_store %arg10[%c0_6, %c0_7], %7 {strides = array<i32>} : memref<16x128xf32, #tpu.memory_space<vmem>>, vector<16x128xf32>,
    %c0_i32_8 = arith.constant 0 : i32
    %9 = arith.cmpi eq, %arg1, %c0_i32_8 : i32
    %10 = arith.extui %9 : i1 to i32
    %c0_i32_9 = arith.constant 0 : i32
    %11 = arith.cmpi ne, %10, %c0_i32_9 : i32
    scf.if %11 {
      %c0_10 = arith.constant 0 : index
      %c0_11 = arith.constant 0 : index
      %12 = vector.load %arg10[%c0_10, %c0_11] : memref<16x128xf32, #tpu.memory_space<vmem>>, vector<16x128xf32>
      %c0_12 = arith.constant 0 : index
      %c0_13 = arith.constant 0 : index
      %13 = vector.load %arg4[%c0_12, %c0_13] : memref<1x128xf32, #tpu.memory_space<vmem>>, vector<1x128xf32>
      %14 = vector.broadcast %13 : vector<1x128xf32> to vector<16x128xf32>
      %15 = arith.addf %12, %14 : vector<16x128xf32>
      %cst_14 = arith.constant 0.000000e+00 : f32
      %16 = vector.broadcast %cst_14 : f32 to vector<16x128xf32>
      %17 = arith.maximumf %15, %16 : vector<16x128xf32>
      %18 = math.absf %15 : vector<16x128xf32>
      %cst_15 = arith.constant 0.000000e+00 : f32
      %19 = vector.broadcast %cst_15 : f32 to vector<16x128xf32>
      %20 = arith.subf %19, %18 : vector<16x128xf32>
      %21 = math.exp %20 : vector<16x128xf32>
      %22 = math.log1p %21 : vector<16x128xf32>
      %23 = arith.addf %17, %22 : vector<16x128xf32>
      %24 = arith.truncf %23 : vector<16x128xf32> to vector<16x128xbf16>
      %c0_16 = arith.constant 0 : index
      %c0_17 = arith.constant 0 : index
      %25 = vector.load %arg5[%c0_16, %c0_17] : memref<128x128xbf16, #tpu.memory_space<vmem>>, vector<128x128xbf16>
      %cst_18 = arith.constant dense<0.000000e+00> : vector<16x128xf32>
      %26 = tpu.matmul %24, %25, %cst_18 {dimension_numbers = #tpu.dot_dimension_numbers<[1], [0], [0], [1], [0, 0, 1, 1], [], []>} : vector<16x128xbf16>, vector<128x128xbf16>, vector<16x128xf32> -> vector<16x128xf32>
      %c0_19 = arith.constant 0 : index
      %c0_20 = arith.constant 0 : index
      %27 = vector.load %arg6[%c0_19, %c0_20] : memref<1x128xf32, #tpu.memory_space<vmem>>, vector<1x128xf32>
      %28 = vector.broadcast %27 : vector<1x128xf32> to vector<16x128xf32>
      %29 = arith.addf %26, %28 : vector<16x128xf32>
      %cst_21 = arith.constant 0.000000e+00 : f32
      %30 = vector.broadcast %cst_21 : f32 to vector<16x128xf32>
      %31 = arith.maximumf %29, %30 : vector<16x128xf32>
      %32 = math.absf %29 : vector<16x128xf32>
      %cst_22 = arith.constant 0.000000e+00 : f32
      %33 = vector.broadcast %cst_22 : f32 to vector<16x128xf32>
      %34 = arith.subf %33, %32 : vector<16x128xf32>
      %35 = math.exp %34 : vector<16x128xf32>
      %36 = math.log1p %35 : vector<16x128xf32>
      %37 = arith.addf %31, %36 : vector<16x128xf32>
      %38 = arith.truncf %37 : vector<16x128xf32> to vector<16x128xbf16>
      %c0_23 = arith.constant 0 : index
      %c0_24 = arith.constant 0 : index
      %39 = vector.load %arg7[%c0_23, %c0_24] : memref<128x128xbf16, #tpu.memory_space<vmem>>, vector<128x128xbf16>
      %cst_25 = arith.constant dense<0.000000e+00> : vector<16x128xf32>
      %40 = tpu.matmul %38, %39, %cst_25 {dimension_numbers = #tpu.dot_dimension_numbers<[1], [0], [0], [1], [0, 0, 1, 1], [], []>} : vector<16x128xbf16>, vector<128x128xbf16>, vector<16x128xf32> -> vector<16x128xf32>
      %c0_26 = arith.constant 0 : index
      %c0_27 = arith.constant 0 : index
      %41 = vector.load %arg8[%c0_26, %c0_27] : memref<1x128xf32, #tpu.memory_space<vmem>>, vector<1x128xf32>
      %42 = vector.broadcast %41 : vector<1x128xf32> to vector<16x128xf32>
      %43 = arith.addf %40, %42 : vector<16x128xf32>
      %c0_28 = arith.constant 0 : index
      %c0_29 = arith.constant 0 : index
      %44 = vector.load %arg9[%c0_28, %c0_29] : memref<16x128xf32, #tpu.memory_space<vmem>>, vector<16x128xf32>
      tpu.vector_store %arg9[%c0_28, %c0_29], %43 {strides = array<i32>} : memref<16x128xf32, #tpu.memory_space<vmem>>, vector<16x128xf32>,
    } else {
    }
    return
  }
  func.func @transform_0(%arg0: i32, %arg1: i32) -> (i32, i32) {
    %c0_i32 = arith.constant 0 : i32
    return %arg0, %arg1 : i32, i32
  }
  func.func @transform_1(%arg0: i32, %arg1: i32) -> (i32, i32) {
    %c0_i32 = arith.constant 0 : i32
    %c0_i32_0 = arith.constant 0 : i32
    return %arg1, %c0_i32 : i32, i32
  }
  func.func @transform_2(%arg0: i32, %arg1: i32) -> (i32, i32) {
    %c0_i32 = arith.constant 0 : i32
    %c0_i32_0 = arith.constant 0 : i32
    %c0_i32_1 = arith.constant 0 : i32
    return %c0_i32, %c0_i32_0 : i32, i32
  }
  func.func @transform_3(%arg0: i32, %arg1: i32) -> (i32, i32) {
    %c0_i32 = arith.constant 0 : i32
    %c0_i32_0 = arith.constant 0 : i32
    %c0_i32_1 = arith.constant 0 : i32
    return %c0_i32, %c0_i32_0 : i32, i32
  }
  func.func @transform_4(%arg0: i32, %arg1: i32) -> (i32, i32) {
    %c0_i32 = arith.constant 0 : i32
    %c0_i32_0 = arith.constant 0 : i32
    %c0_i32_1 = arith.constant 0 : i32
    return %c0_i32, %c0_i32_0 : i32, i32
  }
  func.func @transform_5(%arg0: i32, %arg1: i32) -> (i32, i32) {
    %c0_i32 = arith.constant 0 : i32
    %c0_i32_0 = arith.constant 0 : i32
    %c0_i32_1 = arith.constant 0 : i32
    return %c0_i32, %c0_i32_0 : i32, i32
  }
  func.func @transform_6(%arg0: i32, %arg1: i32) -> (i32, i32) {
    %c0_i32 = arith.constant 0 : i32
    %c0_i32_0 = arith.constant 0 : i32
    %c0_i32_1 = arith.constant 0 : i32
    return %c0_i32, %c0_i32_0 : i32, i32
  }
  func.func @transform_7(%arg0: i32, %arg1: i32) -> (i32, i32) {
    %c0_i32 = arith.constant 0 : i32
    %c0_i32_0 = arith.constant 0 : i32
    return %arg0, %c0_i32 : i32, i32
  }
}

</mosaic_0001>

<llo_original>
// kernel: encoder_forward.1
$region0: #{encoder_forward.1}
  #allocation0 [shape = 'u32[]', space=smem, size = 0x4, offset = 0x4, fixed_abs, tag = 'smem constant byte address 0x4 - core index']
  #allocation1 [shape = 'u32[144,128]{1,0:T(1,128)}', space=vmem, size = 0x12000, scoped, tag = 'internal scratch']
  #allocation2 [shape = 'f32[16,128]{1,0:T(8,128)}', space=vmem, size = 0x2000, scoped, tag = 'scratch operand']
  %s0 = inlined_call_operand.vmem [shape: bf16[16,256], index: 0, kind: input, shape index: {}]
  %s1 = inlined_call_operand.vmem [shape: bf16[256,128], index: 1, kind: input, shape index: {}]
  %s2 = inlined_call_operand.vmem [shape: f32[1,128], index: 2, kind: input, shape index: {}]
  %s3 = inlined_call_operand.vmem [shape: bf16[128,128], index: 3, kind: input, shape index: {}]
  %s4 = inlined_call_operand.vmem [shape: f32[1,128], index: 4, kind: input, shape index: {}]
  %s5 = inlined_call_operand.vmem [shape: bf16[128,128], index: 5, kind: input, shape index: {}]
  %s6 = inlined_call_operand.vmem [shape: f32[1,128], index: 6, kind: input, shape index: {}]
  %s7 = inlined_call_operand.vmem [shape: f32[16,128], index: 7, kind: output, shape index: {}]
  %s8 = sld [smem:[#allocation0]]
  $region46: #{encoder_forward.1} parent=0
    _
  %s10 = ssub.s32 1, %s8
  %s11 = scalar_select 0, %s10, %s8
  // Predicated region
  $region2: #{encoder_forward.1} parent=0 // pred_check
    _
  $region3: #{encoder_forward.1} parent=0 // pred_check_branch
    %13 = sbr.rel (0) target = $region5
  $region4: #{encoder_forward.1} parent=0 // pred_region
    _
  $region5: #{encoder_forward.1} parent=0 // pred_fallthru
    _
  // Predicated region
  $region6: #{encoder_forward.1} parent=0 // pred_check
    _
  $region7: #{encoder_forward.1} parent=0 // pred_check_branch
    %15 = sbr.rel (0) target = $region9
  $region8: #{encoder_forward.1} parent=0 // pred_region
    _
  $region9: #{encoder_forward.1} parent=0 // pred_fallthru
    _
  // Predicated region
  $region10: #{encoder_forward.1} parent=0 // pred_check
    _
  $region11: #{encoder_forward.1} parent=0 // pred_check_branch
    %17 = sbr.rel (0) target = $region13
  $region12: #{encoder_forward.1} parent=0 // pred_region
    _
  $region13: #{encoder_forward.1} parent=0 // pred_fallthru
    _
  // Predicated region
  $region14: #{encoder_forward.1} parent=0 // pred_check
    _
  $region15: #{encoder_forward.1} parent=0 // pred_check_branch
    %19 = sbr.rel (0) target = $region17
  $region16: #{encoder_forward.1} parent=0 // pred_region
    _
  $region17: #{encoder_forward.1} parent=0 // pred_fallthru
    _
  // Predicated region
  $region18: #{encoder_forward.1} parent=0 // pred_check
    _
  $region19: #{encoder_forward.1} parent=0 // pred_check_branch
    %21 = sbr.rel (0) target = $region21
  $region20: #{encoder_forward.1} parent=0 // pred_region
    _
  $region21: #{encoder_forward.1} parent=0 // pred_fallthru
    _
  // Predicated region
  $region22: #{encoder_forward.1} parent=0 // pred_check
    _
  $region23: #{encoder_forward.1} parent=0 // pred_check_branch
    %23 = sbr.rel (0) target = $region25
  $region24: #{encoder_forward.1} parent=0 // pred_region
    _
  $region25: #{encoder_forward.1} parent=0 // pred_fallthru
    _
  // Predicated region
  $region26: #{encoder_forward.1} parent=0 // pred_check
    _
  $region27: #{encoder_forward.1} parent=0 // pred_check_branch
    %25 = sbr.rel (0) target = $region29
  $region28: #{encoder_forward.1} parent=0 // pred_region
    _
  $region29: #{encoder_forward.1} parent=0 // pred_fallthru
    _
  %p27 = scmp.eq.s32.totalorder 0, 0
  // Predicated region
  $region30: #{encoder_forward.1} parent=0 // pred_check
    %p28 = pneg %p27
  $region31: #{encoder_forward.1} parent=0 // pred_check_branch
    %30 = sbr.rel (%p28) target = $region33
  $region32: #{encoder_forward.1} parent=0 // pred_region
    %31 = vst [vmem:[#allocation2] sm:$0xff] 0.0
    %32 = vst [vmem:[#allocation2 + $0x8] sm:$0xff] 0.0
  $region33: #{encoder_forward.1} parent=0 // pred_fallthru
    _
  %v33 = vld [vmem:[#allocation2] sm:$0xff]
  %v34 = vld [vmem:[#allocation2 + $0x8] sm:$0xff]
  %v35 = vld [vmem:[%s0] sm:$0xff]
  %v36 = vld [vmem:[%s0 + $0x8] sm:$0xff]
  %v37 = vld [vmem:[%s1] sm:$0xf]
  %v38 = vld [vmem:[%s1 + $0x4] sm:$0xf]
  %v39 = vld [vmem:[%s1 + $0x8] sm:$0xf]
  %v40 = vld [vmem:[%s1 + $0xc] sm:$0xf]
  %v41 = vld [vmem:[%s1 + $0x10] sm:$0xf]
  %v42 = vld [vmem:[%s1 + $0x14] sm:$0xf]
  %v43 = vld [vmem:[%s1 + $0x18] sm:$0xf]
  %v44 = vld [vmem:[%s1 + $0x1c] sm:$0xf]
  %v45 = vld [vmem:[%s1 + $0x20] sm:$0xf]
  %v46 = vld [vmem:[%s1 + $0x24] sm:$0xf]
  %v47 = vld [vmem:[%s1 + $0x28] sm:$0xf]
  %v48 = vld [vmem:[%s1 + $0x2c] sm:$0xf]
  %v49 = vld [vmem:[%s1 + $0x30] sm:$0xf]
  %v50 = vld [vmem:[%s1 + $0x34] sm:$0xf]
  %v51 = vld [vmem:[%s1 + $0x38] sm:$0xf]
  %v52 = vld [vmem:[%s1 + $0x3c] sm:$0xf]
  %v53 = vld [vmem:[%s1 + $0x40] sm:$0xf]
  %v54 = vld [vmem:[%s1 + $0x44] sm:$0xf]
  %v55 = vld [vmem:[%s1 + $0x48] sm:$0xf]
  %v56 = vld [vmem:[%s1 + $0x4c] sm:$0xf]
  %v57 = vld [vmem:[%s1 + $0x50] sm:$0xf]
  %v58 = vld [vmem:[%s1 + $0x54] sm:$0xf]
  %v59 = vld [vmem:[%s1 + $0x58] sm:$0xf]
  %v60 = vld [vmem:[%s1 + $0x5c] sm:$0xf]
  %v61 = vld [vmem:[%s1 + $0x60] sm:$0xf]
  %v62 = vld [vmem:[%s1 + $0x64] sm:$0xf]
  %v63 = vld [vmem:[%s1 + $0x68] sm:$0xf]
  %v64 = vld [vmem:[%s1 + $0x6c] sm:$0xf]
  %v65 = vld [vmem:[%s1 + $0x70] sm:$0xf]
  %v66 = vld [vmem:[%s1 + $0x74] sm:$0xf]
  %v67 = vld [vmem:[%s1 + $0x78] sm:$0xf]
  %v68 = vld [vmem:[%s1 + $0x7c] sm:$0xf]
  %v71 = vunpack.c.l.b16 %v35
  %v72 = vunpack.c.h.b16 %v35
  %v73 = vunpack.c.l.b16 %v36
  %v74 = vunpack.c.h.b16 %v36
  %v75 = vpack.c.b16 %v73, %v71
  %v76 = vpack.c.b16 %v74, %v72
  %v111 = vunpack.c.l.b16 %v37
  %v112 = vunpack.c.l.b16 %v38
  %v113 = vunpack.c.l.b16 %v39
  %v114 = vunpack.c.l.b16 %v40
  %v115 = vunpack.c.l.b16 %v41
  %v116 = vunpack.c.l.b16 %v42
  %v117 = vunpack.c.l.b16 %v43
  %v118 = vunpack.c.l.b16 %v44
  %v119 = vunpack.c.l.b16 %v45
  %v120 = vunpack.c.l.b16 %v46
  %v121 = vunpack.c.l.b16 %v47
  %v122 = vunpack.c.l.b16 %v48
  %v123 = vunpack.c.l.b16 %v49
  %v124 = vunpack.c.l.b16 %v50
  %v125 = vunpack.c.l.b16 %v51
  %v126 = vunpack.c.l.b16 %v52
  %v127 = vunpack.c.l.b16 %v53
  %v128 = vunpack.c.l.b16 %v54
  %v129 = vunpack.c.l.b16 %v55
  %v130 = vunpack.c.l.b16 %v56
  %v131 = vunpack.c.l.b16 %v57
  %v132 = vunpack.c.l.b16 %v58
  %v133 = vunpack.c.l.b16 %v59
  %v134 = vunpack.c.l.b16 %v60
  %v135 = vunpack.c.l.b16 %v61
  %v136 = vunpack.c.l.b16 %v62
  %v137 = vunpack.c.l.b16 %v63
  %v138 = vunpack.c.l.b16 %v64
  %v139 = vunpack.c.l.b16 %v65
  %v140 = vunpack.c.l.b16 %v66
  %v141 = vunpack.c.l.b16 %v67
  %v142 = vunpack.c.l.b16 %v68
  %v143 = vpack.c.b16 %v112, %v111
  %v144 = vpack.c.b16 %v114, %v113
  %v145 = vpack.c.b16 %v116, %v115
  %v146 = vpack.c.b16 %v118, %v117
  %v147 = vpack.c.b16 %v120, %v119
  %v148 = vpack.c.b16 %v122, %v121
  %v149 = vpack.c.b16 %v124, %v123
  %v150 = vpack.c.b16 %v126, %v125
  %v151 = vpack.c.b16 %v128, %v127
  %v152 = vpack.c.b16 %v130, %v129
  %v153 = vpack.c.b16 %v132, %v131
  %v154 = vpack.c.b16 %v134, %v133
  %v155 = vpack.c.b16 %v136, %v135
  %v156 = vpack.c.b16 %v138, %v137
  %v157 = vpack.c.b16 %v140, %v139
  %v158 = vpack.c.b16 %v142, %v141
  %175 = vmatprep.subr.bf16.mxu0 0
  %176 = vmatpush1.bf16.msra.mxu0 %v150
  %177 = vmatprep.subr.bf16.mxu0 0
  %178 = vmatpush1.bf16.msra.mxu0 %v149
  %179 = vmatprep.subr.bf16.mxu0 0
  %180 = vmatpush1.bf16.msra.mxu0 %v148
  %181 = vmatprep.subr.bf16.mxu0 0
  %182 = vmatpush1.bf16.msra.mxu0 %v147
  %183 = vmatprep.subr.bf16.mxu0 0
  %184 = vmatpush1.bf16.msra.mxu0 %v146
  %185 = vmatprep.subr.bf16.mxu0 0
  %186 = vmatpush1.bf16.msra.mxu0 %v145
  %187 = vmatprep.subr.bf16.mxu0 0
  %188 = vmatpush1.bf16.msra.mxu0 %v144
  %189 = vmatprep.subr.bf16.mxu0 0
  %190 = vmatpush1.bf16.msra.mxu0 %v143
  %191 = vmatprep.subr.bf16.mxu0 0
  %192 = vmatpush2.bf16.msra.mxu0 %v158
  %193 = vmatprep.subr.bf16.mxu0 0
  %194 = vmatpush2.bf16.msra.mxu0 %v157
  %195 = vmatprep.subr.bf16.mxu0 0
  %196 = vmatpush2.bf16.msra.mxu0 %v156
  %197 = vmatprep.subr.bf16.mxu0 0
  %198 = vmatpush2.bf16.msra.mxu0 %v155
  %199 = vmatprep.subr.bf16.mxu0 0
  %200 = vmatpush2.bf16.msra.mxu0 %v154
  %201 = vmatprep.subr.bf16.mxu0 0
  %202 = vmatpush2.bf16.msra.mxu0 %v153
  %203 = vmatprep.subr.bf16.mxu0 0
  %204 = vmatpush2.bf16.msra.mxu0 %v152
  %205 = vmatprep.subr.bf16.mxu0 0
  %206 = vmatpush2.bf16.msra.mxu0 %v151
  %207 = vmatprep.mubr.bf16.mxu0 %v76
  %208 = vmatmul.mubr.bf16.gmra.mxu0 %v75
  %v209 = vpop.f32.mrf.mxu0
  %v210 = vadd.f32 0.0, %v209
  %v211 = vpop.f32.mrf.mxu0
  %v212 = vpop.f32.mrf.mxu0
  %v213 = vadd.f32 0.0, %v212
  %v214 = vpop.f32.mrf.mxu0
  %215 = vdwg.mxu0
  %v216 = vadd.f32 %v33, %v210
  %v217 = vadd.f32 %v34, %v213
  %218 = vst [vmem:[#allocation2] sm:$0xff] %v216
  %219 = vst [vmem:[#allocation2 + $0x8] sm:$0xff] %v217
  // Predicated region
  $region34: #{encoder_forward.1} parent=0 // pred_check
    %p220 = pneg %p27
  $region35: #{encoder_forward.1} parent=0 // pred_check_branch
    %222 = sbr.rel (%p220) target = $region37
  $region36: #{encoder_forward.1} parent=0 // pred_region
    %v223 = vld [vmem:[#allocation2] sm:$0xff]
    %v224 = vld [vmem:[#allocation2 + $0x8] sm:$0xff]
    %v225 = vld [vmem:[%s2] sm:$0x1]
    %v227 = vlaneseq
    %v228 = vshrl.u32 %v227, 7
    %v229 = vsub.s32 0, %v228
    %v230 = vrot.slane %v225, %v229
    %v232 = vadd.f32 %v223, %v230
    %v233 = vadd.f32 %v224, %v230
    %v234 = vmax.f32 %v232, 0.0
    %v235 = vmax.f32 %v233, 0.0
    %v236 = vand.u32 2147483647, %v232
    %v237 = vand.u32 2147483647, %v233
    %v238 = vsub.f32 0.0, %v236
    %v239 = vsub.f32 0.0, %v237
    %v240 = vmul.f32 %v238, 1.442695
    %v241 = vpow.pop %v240
    %v242 = vmul.f32 %v239, 1.442695
    %v243 = vpow.pop %v242
    %v244 = vadd.f32 %v241, 1.0
    %v245 = vlog2.pop %v244
    %v246 = vmul.f32 %v245, 0.6931472
    %v247 = vmul.f32 -0.5, %v241
    %v248 = vadd.f32 %v247, 1.0
    %v249 = vmul.f32 %v248, %v241
    %v250 = vand.u32 2147483647, %v241
    %vm251 = vcmp.lt.f32.partialorder %v250, 0.0004427343
    %v252 = vsel %vm251, %v249, %v246
    %v253 = vadd.f32 %v243, 1.0
    %v254 = vlog2.pop %v253
    %v255 = vmul.f32 %v254, 0.6931472
    %v256 = vmul.f32 -0.5, %v243
    %v257 = vadd.f32 %v256, 1.0
    %v258 = vmul.f32 %v257, %v243
    %v259 = vand.u32 2147483647, %v243
    %vm260 = vcmp.lt.f32.partialorder %v259, 0.0004427343
    %v261 = vsel %vm260, %v258, %v255
    %v262 = vadd.f32 %v234, %v252
    %v263 = vadd.f32 %v235, %v261
    %v264 = vpack.c.bf16 %v263, %v262
    %v265 = vld [vmem:[%s3] sm:$0xf]
    %v266 = vld [vmem:[%s3 + $0x4] sm:$0xf]
    %v267 = vld [vmem:[%s3 + $0x8] sm:$0xf]
    %v268 = vld [vmem:[%s3 + $0xc] sm:$0xf]
    %v269 = vld [vmem:[%s3 + $0x10] sm:$0xf]
    %v270 = vld [vmem:[%s3 + $0x14] sm:$0xf]
    %v271 = vld [vmem:[%s3 + $0x18] sm:$0xf]
    %v272 = vld [vmem:[%s3 + $0x1c] sm:$0xf]
    %v273 = vld [vmem:[%s3 + $0x20] sm:$0xf]
    %v274 = vld [vmem:[%s3 + $0x24] sm:$0xf]
    %v275 = vld [vmem:[%s3 + $0x28] sm:$0xf]
    %v276 = vld [vmem:[%s3 + $0x2c] sm:$0xf]
    %v277 = vld [vmem:[%s3 + $0x30] sm:$0xf]
    %v278 = vld [vmem:[%s3 + $0x34] sm:$0xf]
    %v279 = vld [vmem:[%s3 + $0x38] sm:$0xf]
    %v280 = vld [vmem:[%s3 + $0x3c] sm:$0xf]
    %v281 = vld [vmem:[%s4] sm:$0x1]
    %v283 = vlaneseq
    %v284 = vshrl.u32 %v283, 7
    %v285 = vsub.s32 0, %v284
    %v286 = vrot.slane %v281, %v285
    %v304 = vunpack.c.l.b16 %v265
    %v305 = vunpack.c.l.b16 %v266
    %v306 = vunpack.c.l.b16 %v267
    %v307 = vunpack.c.l.b16 %v268
    %v308 = vunpack.c.l.b16 %v269
    %v309 = vunpack.c.l.b16 %v270
    %v310 = vunpack.c.l.b16 %v271
    %v311 = vunpack.c.l.b16 %v272
    %v312 = vunpack.c.l.b16 %v273
    %v313 = vunpack.c.l.b16 %v274
    %v314 = vunpack.c.l.b16 %v275
    %v315 = vunpack.c.l.b16 %v276
    %v316 = vunpack.c.l.b16 %v277
    %v317 = vunpack.c.l.b16 %v278
    %v318 = vunpack.c.l.b16 %v279
    %v319 = vunpack.c.l.b16 %v280
    %v320 = vpack.c.b16 %v305, %v304
    %v321 = vpack.c.b16 %v307, %v306
    %v322 = vpack.c.b16 %v309, %v308
    %v323 = vpack.c.b16 %v311, %v310
    %v324 = vpack.c.b16 %v313, %v312
    %v325 = vpack.c.b16 %v315, %v314
    %v326 = vpack.c.b16 %v317, %v316
    %v327 = vpack.c.b16 %v319, %v318
    %336 = vmatprep.subr.bf16.mxu0 0
    %337 = vmatpush1.bf16.msra.mxu0 %v327
    %338 = vmatprep.subr.bf16.mxu0 0
    %339 = vmatpush1.bf16.msra.mxu0 %v326
    %340 = vmatprep.subr.bf16.mxu0 0
    %341 = vmatpush1.bf16.msra.mxu0 %v325
    %342 = vmatprep.subr.bf16.mxu0 0
    %343 = vmatpush1.bf16.msra.mxu0 %v324
    %344 = vmatprep.subr.bf16.mxu0 0
    %345 = vmatpush1.bf16.msra.mxu0 %v323
    %346 = vmatprep.subr.bf16.mxu0 0
    %347 = vmatpush1.bf16.msra.mxu0 %v322
    %348 = vmatprep.subr.bf16.mxu0 0
    %349 = vmatpush1.bf16.msra.mxu0 %v321
    %350 = vmatprep.subr.bf16.mxu0 0
    %351 = vmatpush1.bf16.msra.mxu0 %v320
    %352 = vmatprep.subr.bf16.mxu0 0
    %353 = vmatpush2.bf16.msra.mxu0 0
    %354 = vmatprep.subr.bf16.mxu0 0
    %355 = vmatpush2.bf16.msra.mxu0 0
    %356 = vmatprep.subr.bf16.mxu0 0
    %357 = vmatpush2.bf16.msra.mxu0 0
    %358 = vmatprep.subr.bf16.mxu0 0
    %359 = vmatpush2.bf16.msra.mxu0 0
    %360 = vmatprep.subr.bf16.mxu0 0
    %361 = vmatpush2.bf16.msra.mxu0 0
    %362 = vmatprep.subr.bf16.mxu0 0
    %363 = vmatpush2.bf16.msra.mxu0 0
    %364 = vmatprep.subr.bf16.mxu0 0
    %365 = vmatpush2.bf16.msra.mxu0 0
    %366 = vmatprep.subr.bf16.mxu0 0
    %367 = vmatpush2.bf16.msra.mxu0 0
    %368 = vmatprep.mubr.bf16.mxu0 0
    %369 = vmatmul.mubr.bf16.gmra.mxu0 %v264
    %v370 = vpop.f32.mrf.mxu0
    %v371 = vadd.f32 %v286, %v370
    %v372 = vpop.f32.mrf.mxu0
    %v373 = vpop.f32.mrf.mxu0
    %v374 = vadd.f32 %v286, %v373
    %v375 = vpop.f32.mrf.mxu0
    %376 = vdwg.mxu0
    %v377 = vmax.f32 %v371, 0.0
    %v378 = vmax.f32 %v374, 0.0
    %v379 = vand.u32 2147483647, %v371
    %v380 = vand.u32 2147483647, %v374
    %v381 = vsub.f32 0.0, %v379
    %v382 = vsub.f32 0.0, %v380
    %v383 = vmul.f32 %v381, 1.442695
    %v384 = vpow.pop %v383
    %v385 = vmul.f32 %v382, 1.442695
    %v386 = vpow.pop %v385
    %v387 = vadd.f32 %v384, 1.0
    %v388 = vlog2.pop %v387
    %v389 = vmul.f32 %v388, 0.6931472
    %v390 = vmul.f32 -0.5, %v384
    %v391 = vadd.f32 %v390, 1.0
    %v392 = vmul.f32 %v391, %v384
    %v393 = vand.u32 2147483647, %v384
    %vm394 = vcmp.lt.f32.partialorder %v393, 0.0004427343
    %v395 = vsel %vm394, %v392, %v389
    %v396 = vadd.f32 %v386, 1.0
    %v397 = vlog2.pop %v396
    %v398 = vmul.f32 %v397, 0.6931472
    %v399 = vmul.f32 -0.5, %v386
    %v400 = vadd.f32 %v399, 1.0
    %v401 = vmul.f32 %v400, %v386
    %v402 = vand.u32 2147483647, %v386
    %vm403 = vcmp.lt.f32.partialorder %v402, 0.0004427343
    %v404 = vsel %vm403, %v401, %v398
    %v405 = vadd.f32 %v377, %v395
    %v406 = vadd.f32 %v378, %v404
    %v407 = vpack.c.bf16 %v406, %v405
    %v408 = vld [vmem:[%s5] sm:$0xf]
    %v409 = vld [vmem:[%s5 + $0x4] sm:$0xf]
    %v410 = vld [vmem:[%s5 + $0x8] sm:$0xf]
    %v411 = vld [vmem:[%s5 + $0xc] sm:$0xf]
    %v412 = vld [vmem:[%s5 + $0x10] sm:$0xf]
    %v413 = vld [vmem:[%s5 + $0x14] sm:$0xf]
    %v414 = vld [vmem:[%s5 + $0x18] sm:$0xf]
    %v415 = vld [vmem:[%s5 + $0x1c] sm:$0xf]
    %v416 = vld [vmem:[%s5 + $0x20] sm:$0xf]
    %v417 = vld [vmem:[%s5 + $0x24] sm:$0xf]
    %v418 = vld [vmem:[%s5 + $0x28] sm:$0xf]
    %v419 = vld [vmem:[%s5 + $0x2c] sm:$0xf]
    %v420 = vld [vmem:[%s5 + $0x30] sm:$0xf]
    %v421 = vld [vmem:[%s5 + $0x34] sm:$0xf]
    %v422 = vld [vmem:[%s5 + $0x38] sm:$0xf]
    %v423 = vld [vmem:[%s5 + $0x3c] sm:$0xf]
    %v424 = vld [vmem:[%s6] sm:$0x1]
    %v426 = vlaneseq
    %v427 = vshrl.u32 %v426, 7
    %v428 = vsub.s32 0, %v427
    %v429 = vrot.slane %v424, %v428
    %v447 = vunpack.c.l.b16 %v408
    %v448 = vunpack.c.l.b16 %v409
    %v449 = vunpack.c.l.b16 %v410
    %v450 = vunpack.c.l.b16 %v411
    %v451 = vunpack.c.l.b16 %v412
    %v452 = vunpack.c.l.b16 %v413
    %v453 = vunpack.c.l.b16 %v414
    %v454 = vunpack.c.l.b16 %v415
    %v455 = vunpack.c.l.b16 %v416
    %v456 = vunpack.c.l.b16 %v417
    %v457 = vunpack.c.l.b16 %v418
    %v458 = vunpack.c.l.b16 %v419
    %v459 = vunpack.c.l.b16 %v420
    %v460 = vunpack.c.l.b16 %v421
    %v461 = vunpack.c.l.b16 %v422
    %v462 = vunpack.c.l.b16 %v423
    %v463 = vpack.c.b16 %v448, %v447
    %v464 = vpack.c.b16 %v450, %v449
    %v465 = vpack.c.b16 %v452, %v451
    %v466 = vpack.c.b16 %v454, %v453
    %v467 = vpack.c.b16 %v456, %v455
    %v468 = vpack.c.b16 %v458, %v457
    %v469 = vpack.c.b16 %v460, %v459
    %v470 = vpack.c.b16 %v462, %v461
    %479 = vmatprep.subr.bf16.mxu0 0
    %480 = vmatpush1.bf16.msra.mxu0 %v470
    %481 = vmatprep.subr.bf16.mxu0 0
    %482 = vmatpush1.bf16.msra.mxu0 %v469
    %483 = vmatprep.subr.bf16.mxu0 0
    %484 = vmatpush1.bf16.msra.mxu0 %v468
    %485 = vmatprep.subr.bf16.mxu0 0
    %486 = vmatpush1.bf16.msra.mxu0 %v467
    %487 = vmatprep.subr.bf16.mxu0 0
    %488 = vmatpush1.bf16.msra.mxu0 %v466
    %489 = vmatprep.subr.bf16.mxu0 0
    %490 = vmatpush1.bf16.msra.mxu0 %v465
    %491 = vmatprep.subr.bf16.mxu0 0
    %492 = vmatpush1.bf16.msra.mxu0 %v464
    %493 = vmatprep.subr.bf16.mxu0 0
    %494 = vmatpush1.bf16.msra.mxu0 %v463
    %495 = vmatprep.subr.bf16.mxu0 0
    %496 = vmatpush2.bf16.msra.mxu0 0
    %497 = vmatprep.subr.bf16.mxu0 0
    %498 = vmatpush2.bf16.msra.mxu0 0
    %499 = vmatprep.subr.bf16.mxu0 0
    %500 = vmatpush2.bf16.msra.mxu0 0
    %501 = vmatprep.subr.bf16.mxu0 0
    %502 = vmatpush2.bf16.msra.mxu0 0
    %503 = vmatprep.subr.bf16.mxu0 0
    %504 = vmatpush2.bf16.msra.mxu0 0
    %505 = vmatprep.subr.bf16.mxu0 0
    %506 = vmatpush2.bf16.msra.mxu0 0
    %507 = vmatprep.subr.bf16.mxu0 0
    %508 = vmatpush2.bf16.msra.mxu0 0
    %509 = vmatprep.subr.bf16.mxu0 0
    %510 = vmatpush2.bf16.msra.mxu0 0
    %511 = vmatprep.mubr.bf16.mxu0 0
    %512 = vmatmul.mubr.bf16.gmra.mxu0 %v407
    %v513 = vpop.f32.mrf.mxu0
    %v514 = vadd.f32 %v429, %v513
    %v515 = vpop.f32.mrf.mxu0
    %v516 = vpop.f32.mrf.mxu0
    %v517 = vadd.f32 %v429, %v516
    %v518 = vpop.f32.mrf.mxu0
    %519 = vdwg.mxu0
    %520 = vst [vmem:[%s7] sm:$0xff] %v514
    %521 = vst [vmem:[%s7 + $0x8] sm:$0xff] %v517
  $region37: #{encoder_forward.1} parent=0 // pred_fallthru
    _
  // Predicated region
  $region38: #{encoder_forward.1} parent=0 // pred_check
    _
  $region39: #{encoder_forward.1} parent=0 // pred_check_branch
    %523 = sbr.rel (0) target = $region41
  $region40: #{encoder_forward.1} parent=0 // pred_region
    _
  $region41: #{encoder_forward.1} parent=0 // pred_fallthru
    _
  // Predicated region
  $region42: #{encoder_forward.1} parent=0 // pred_check
    _
  $region43: #{encoder_forward.1} parent=0 // pred_check_branch
    %525 = sbr.rel (0) target = $region45
  $region44: #{encoder_forward.1} parent=0 // pred_region
    _
  $region45: #{encoder_forward.1} parent=0 // pred_fallthru
    _

</llo_original>
